<compile_context>
chip_gen: v7x
topology: tpu7x:2x2x1
jax: 0.10.0
libtpu: 0.0.40
codegen_flags: <defaults>
</compile_context>

<pallas_src>
import jax
import jax.numpy as jnp
from jax import lax
from jax.experimental import pallas as pl
from jax.experimental.pallas import tpu as pltpu


# ----------------------------------------------------------------------------
# Pallas kernel: one block of nb batch images per grid step, batch folded onto
# the lane axis (L = nb*HW lanes).
#   patch_ref : (K, L)   bf16 im2col patches, K = 9*Cin
#   w3k_ref   : (Cb, K)  bf16 conv3x3 weight with BN scale folded in
#   bnb_ref   : (Cb, 1)  f32 folded BN bias
#   wh_ref    : (9, Cb)  f32 fused 1x1 heads [sig(2); tanh(2); stroke(5)]
#   bh_ref    : (9, 1)   f32 fused head biases
#   out_ref   : (9, L)   f32 merged head outputs (activations applied)
# ----------------------------------------------------------------------------
def _estimator_kernel(patch_ref, w3k_ref, bnb_ref, wh_ref, bh_ref, out_ref):
    # conv3x3 via im2col over the whole batch block: ONE bf16 MXU matmul.
    feat = jnp.dot(w3k_ref[...], patch_ref[...],
                   preferred_element_type=jnp.float32)              # (Cb, L)
    feat = jnp.maximum(feat + bnb_ref[...], 0.0)                    # folded BN + ReLU

    # fused 1x1 heads: ONE matmul -> (9, L)
    heads = (jnp.dot(wh_ref[...], feat,
                     preferred_element_type=jnp.float32) + bh_ref[...])

    # Per-row activation select: rows 0-1 sigmoid, 2-3 tanh, 4-8 identity.
    # Row mask avoids sublane slices / three separate small stores.
    row = lax.broadcasted_iota(jnp.int32, heads.shape, 0)
    out_ref[...] = jnp.where(row < 2, jax.nn.sigmoid(heads),
                             jnp.where(row < 4, jnp.tanh(heads), heads))


# ----------------------------------------------------------------------------
# VMEM-aware batch-block selection.
# ----------------------------------------------------------------------------
def _pick_batch_block(n, k, hw, cb, patch_bytes=2, vmem_budget=12 << 20):
    """Largest divisor of n whose double-buffered block fits the VMEM budget,
    preferring >=4 grid steps with >=~1024 fused lanes per step when possible."""
    per_img = (2 * k * hw * patch_bytes        # double-buffered bf16 patch block
               + 2 * 9 * hw * 4                # double-buffered f32 output block
               + (cb + 9) * hw * 4)            # in-kernel f32 intermediates
    nb_cap = max(1, vmem_budget // per_img)
    divs = [d for d in range(1, n + 1) if n % d == 0 and d <= nb_cap]
    good = [d for d in divs if n // d >= 4 and d * hw >= 1024]
    return max(good) if good else max(divs)


# ----------------------------------------------------------------------------
# Wrapper: NCHW in / NCHW out. Layout prep (im2col with batch folded on lanes,
# BN fold, head fusion, bf16 cast of MXU operands) happens here.
# ----------------------------------------------------------------------------
def effect_param_estimator(x_nchw, params, *, batch_block=None):
    """x_nchw: (N, Cin, H, W) float32. Returns (sig, tanh, stroke) in NCHW."""
    N, Cin, H, W = x_nchw.shape
    Cb = params["w3"].shape[0]
    HW = H * W
    K = 9 * Cin

    nb = _pick_batch_block(N, K, HW, Cb) if batch_block is None else batch_block
    assert N % nb == 0
    grid = (N // nb,)
    L = nb * HW  # fused lanes per grid step (multiple of 128 here: HW=256)

    x = x_nchw.astype(jnp.float32)

    # ---- fold inference BatchNorm into the conv weight + one bias ----
    eps = params.get("bn_eps", 1e-5)
    scale = params["bn_gamma"] * lax.rsqrt(params["bn_var"] + eps)        # (Cb,)
    bn_bias = (params["bn_beta"] - params["bn_mean"] * scale)[:, None]    # (Cb,1)
    w3s = params["w3"] * scale[:, None, None, None]                       # (Cb,Cin,3,3)
    # K index = tap*Cin + c with tap = dy*3 + dx (matches patch layout below)
    w3k = jnp.transpose(w3s, (0, 2, 3, 1)).reshape(Cb, K).astype(jnp.bfloat16)

    # ---- fuse the three 1x1 heads into one weight/bias ----
    wh = jnp.concatenate(
        [params["w_sig"], params["w_tanh"], params["w_stroke"]], axis=0)  # (9, Cb)
    bh = jnp.concatenate(
        [params["b_sig"], params["b_tanh"], params["b_stroke"]])[:, None] # (9, 1)

    # ---- wrapper-side im2col, batch folded onto the lane axis: (K, N*HW) ----
    xp = jnp.pad(x, ((0, 0), (0, 0), (1, 1), (1, 1)))
    taps = jnp.stack([xp[:, :, dy:dy + H, dx:dx + W]
                      for dy in range(3) for dx in range(3)], axis=0)     # (9,N,Cin,H,W)
    patches = (jnp.transpose(taps, (0, 2, 1, 3, 4))                       # (9,Cin,N,H,W)
               .reshape(K, N * HW)
               .astype(jnp.bfloat16))                                     # halve DMA bytes

    full = lambda shape: pl.BlockSpec(shape, lambda i: (0, 0))

    out = pl.pallas_call(
        _estimator_kernel,
        out_shape=jax.ShapeDtypeStruct((9, N * HW), jnp.float32),
        grid_spec=pltpu.PrefetchScalarGridSpec(
            num_scalar_prefetch=0,
            grid=grid,
            in_specs=[
                pl.BlockSpec((K, L), lambda i: (0, i)),   # bf16 patches
                full((Cb, K)),                            # bf16 conv weight (BN folded)
                full((Cb, 1)),                            # f32 folded BN bias
                full((9, Cb)),                            # f32 fused head weights
                full((9, 1)),                             # f32 fused head biases
            ],
            out_specs=pl.BlockSpec((9, L), lambda i: (0, i)),
        ),
        compiler_params=pltpu.CompilerParams(
            dimension_semantics=("parallel",)),
    )(patches, w3k, bn_bias, wh, bh)

    # (9, N*HW) -> (N, 9, H, W), then split the fused heads.
    out = jnp.transpose(out.reshape(9, N, H, W), (1, 0, 2, 3))
    return out[:, 0:2], out[:, 2:4], out[:, 4:9]


# ----------------------------------------------------------------------------
# Deterministic parameter init, mirroring the module's initialize_weights():
# xavier_normal_ for conv weights, zero biases, BN gamma=1 / beta=0 and
# default running stats (mean=0, var=1). Stored in PyTorch layouts.
# ----------------------------------------------------------------------------
def init_params(key, in_channels, bottleneck_channels):
    k3, ks, kt, kk = jax.random.split(key, 4)
    Cin, Cb = in_channels, bottleneck_channels

    def xavier_normal(k, shape, fan_in, fan_out):
        std = (2.0 / (fan_in + fan_out)) ** 0.5
        return std * jax.random.normal(k, shape, jnp.float32)

    return dict(
        # conv3x3 in PyTorch OIHW layout
        w3=xavier_normal(k3, (Cb, Cin, 3, 3), fan_in=Cin * 9, fan_out=Cb * 9),
        # BatchNorm2d (inference running stats, deterministic init)
        bn_gamma=jnp.ones((Cb,), jnp.float32),
        bn_beta=jnp.zeros((Cb,), jnp.float32),
        bn_mean=jnp.zeros((Cb,), jnp.float32),
        bn_var=jnp.ones((Cb,), jnp.float32),
        bn_eps=1e-5,
        # 1x1 heads, PyTorch (out, in)
        w_sig=xavier_normal(ks, (2, Cb), Cb, 2),
        b_sig=jnp.zeros((2,), jnp.float32),
        w_tanh=xavier_normal(kt, (2, Cb), Cb, 2),
        b_tanh=jnp.zeros((2,), jnp.float32),
        w_stroke=xavier_normal(kk, (5, Cb), Cb, 5),
        b_stroke=jnp.zeros((5,), jnp.float32),
    )


# ----------------------------------------------------------------------------
# Pure-JAX reference (correctness sanity check)
# ----------------------------------------------------------------------------
def reference(x_nchw, params):
    x = x_nchw.astype(jnp.float32)
    feat = lax.conv_general_dilated(
        x, params["w3"], window_strides=(1, 1), padding="SAME",
        dimension_numbers=("NCHW", "OIHW", "NCHW"))
    eps = params.get("bn_eps", 1e-5)
    scale = params["bn_gamma"] / jnp.sqrt(params["bn_var"] + eps)
    bias = params["bn_beta"] - params["bn_mean"] * scale
    feat = feat * scale[None, :, None, None] + bias[None, :, None, None]
    feat = jnp.maximum(feat, 0.0)

    def head(w, b):
        return jnp.einsum("nchw,oc->nohw", feat, w) + b[None, :, None, None]

    sig = jax.nn.sigmoid(head(params["w_sig"], params["b_sig"]))
    tnh = jnp.tanh(head(params["w_tanh"], params["b_tanh"]))
    stk = head(params["w_stroke"], params["b_stroke"])
    return sig, tnh, stk


if __name__ == "__main__":
    N, Cin, H, W = 2, 4, 16, 16
    Cb = 32

    key = jax.random.PRNGKey(0)
    kx, kp = jax.random.split(key)
    x = jax.random.normal(kx, (N, Cin, H, W), jnp.float32)
    params = init_params(kp, Cin, Cb)

    sig, tnh, stk = effect_param_estimator(x, params)
    jax.block_until_ready((sig, tnh, stk))

    r_sig, r_tnh, r_stk = reference(x, params)
    assert sig.shape == (N, 2, H, W)
    assert tnh.shape == (N, 2, H, W)
    assert stk.shape == (N, 5, H, W)
    # Tolerance relaxed vs the pure-f32 reference: MXU operands are bf16
    # (f32 accumulation); observed error is O(1e-3) at these shapes.
    assert jnp.max(jnp.abs(sig - r_sig)) < 2e-2
    assert jnp.max(jnp.abs(tnh - r_tnh)) < 2e-2
    assert jnp.max(jnp.abs(stk - r_stk)) < 2e-2

    print("KERNEL_OK")
</pallas_src>

<mosaic_0001>
module attributes {stable_mosaic.version = 11 : i64} {
  func.func @_estimator_kernel(%arg0: i32, %arg1: memref<36x512xbf16, #tpu.memory_space<vmem>>, %arg2: memref<32x36xbf16, #tpu.memory_space<vmem>>, %arg3: memref<32x1xf32, #tpu.memory_space<vmem>>, %arg4: memref<9x32xf32, #tpu.memory_space<vmem>>, %arg5: memref<9x1xf32, #tpu.memory_space<vmem>>, %arg6: memref<9x512xf32, #tpu.memory_space<vmem>>) attributes {dimension_semantics = [#tpu.dimension_semantics<parallel>], iteration_bounds = array<i64: 1>, scalar_prefetch = 0 : i64, scratch_operands = 0 : i64, tpu.core_type = #tpu.core_type<tc>, window_params = [{transform_indices = @transform_0, window_bounds = array<i64: 36, 512>}, {pipeline_mode = #tpu.pipeline_mode<synchronous>, transform_indices = @transform_1, window_bounds = array<i64: 32, 36>}, {pipeline_mode = #tpu.pipeline_mode<synchronous>, transform_indices = @transform_2, window_bounds = array<i64: 32, 1>}, {pipeline_mode = #tpu.pipeline_mode<synchronous>, transform_indices = @transform_3, window_bounds = array<i64: 9, 32>}, {pipeline_mode = #tpu.pipeline_mode<synchronous>, transform_indices = @transform_4, window_bounds = array<i64: 9, 1>}, {transform_indices = @transform_5, window_bounds = array<i64: 9, 512>}]} {
    %c0 = arith.constant 0 : index
    %c0_0 = arith.constant 0 : index
    %0 = vector.load %arg2[%c0, %c0_0] : memref<32x36xbf16, #tpu.memory_space<vmem>>, vector<32x36xbf16>
    %c0_1 = arith.constant 0 : index
    %c0_2 = arith.constant 0 : index
    %1 = vector.load %arg1[%c0_1, %c0_2] : memref<36x512xbf16, #tpu.memory_space<vmem>>, vector<36x512xbf16>
    %cst = arith.constant dense<0.000000e+00> : vector<32x512xf32>
    %2 = tpu.matmul %0, %1, %cst {dimension_numbers = #tpu.dot_dimension_numbers<[1], [0], [0], [1], [0, 0, 1, 1], [], []>} : vector<32x36xbf16>, vector<36x512xbf16>, vector<32x512xf32> -> vector<32x512xf32>
    %c0_3 = arith.constant 0 : index
    %c0_4 = arith.constant 0 : index
    %3 = vector.load %arg3[%c0_3, %c0_4] : memref<32x1xf32, #tpu.memory_space<vmem>>, vector<32x1xf32>
    %4 = vector.broadcast %3 : vector<32x1xf32> to vector<32x512xf32>
    %5 = arith.addf %2, %4 : vector<32x512xf32>
    %cst_5 = arith.constant 0.000000e+00 : f32
    %6 = vector.broadcast %cst_5 : f32 to vector<32x512xf32>
    %7 = arith.maximumf %5, %6 : vector<32x512xf32>
    %c0_6 = arith.constant 0 : index
    %c0_7 = arith.constant 0 : index
    %8 = vector.load %arg4[%c0_6, %c0_7] : memref<9x32xf32, #tpu.memory_space<vmem>>, vector<9x32xf32>
    %cst_8 = arith.constant dense<0.000000e+00> : vector<9x512xf32>
    %9 = tpu.matmul %8, %7, %cst_8 {dimension_numbers = #tpu.dot_dimension_numbers<[1], [0], [0], [1], [0, 0, 1, 1], [], []>} : vector<9x32xf32>, vector<32x512xf32>, vector<9x512xf32> -> vector<9x512xf32>
    %c0_9 = arith.constant 0 : index
    %c0_10 = arith.constant 0 : index
    %10 = vector.load %arg5[%c0_9, %c0_10] : memref<9x1xf32, #tpu.memory_space<vmem>>, vector<9x1xf32>
    %11 = vector.broadcast %10 : vector<9x1xf32> to vector<9x512xf32>
    %12 = arith.addf %9, %11 : vector<9x512xf32>
    %13 = tpu.iota {dimensions = array<i32: 0>} : vector<9x512xi32>
    %c2_i32 = arith.constant 2 : i32
    %14 = vector.broadcast %c2_i32 : i32 to vector<9x512xi32>
    %15 = arith.cmpi slt, %13, %14 : vector<9x512xi32>
    %16 = arith.negf %12 : vector<9x512xf32>
    %17 = math.exp %16 : vector<9x512xf32>
    %cst_11 = arith.constant 1.000000e+00 : f32
    %18 = vector.broadcast %cst_11 : f32 to vector<9x512xf32>
    %19 = arith.addf %18, %17 : vector<9x512xf32>
    %20 = arith.divf %18, %19 : vector<9x512xf32>
    %c4_i32 = arith.constant 4 : i32
    %21 = vector.broadcast %c4_i32 : i32 to vector<9x512xi32>
    %22 = arith.cmpi slt, %13, %21 : vector<9x512xi32>
    %23 = math.tanh %12 : vector<9x512xf32>
    %24 = arith.select %22, %23, %12 : vector<9x512xi1>, vector<9x512xf32>
    %25 = arith.select %15, %20, %24 : vector<9x512xi1>, vector<9x512xf32>
    %c0_12 = arith.constant 0 : index
    %c0_13 = arith.constant 0 : index
    %26 = vector.load %arg6[%c0_12, %c0_13] : memref<9x512xf32, #tpu.memory_space<vmem>>, vector<9x512xf32>
    tpu.vector_store %arg6[%c0_12, %c0_13], %25 {strides = array<i32>} : memref<9x512xf32, #tpu.memory_space<vmem>>, vector<9x512xf32>,
    return
  }
  func.func @transform_0(%arg0: i32) -> (i32, i32) {
    %c0_i32 = arith.constant 0 : i32
    %c0_i32_0 = arith.constant 0 : i32
    return %c0_i32, %arg0 : i32, i32
  }
  func.func @transform_1(%arg0: i32) -> (i32, i32) {
    %c0_i32 = arith.constant 0 : i32
    %c0_i32_0 = arith.constant 0 : i32
    %c0_i32_1 = arith.constant 0 : i32
    return %c0_i32, %c0_i32_0 : i32, i32
  }
  func.func @transform_2(%arg0: i32) -> (i32, i32) {
    %c0_i32 = arith.constant 0 : i32
    %c0_i32_0 = arith.constant 0 : i32
    %c0_i32_1 = arith.constant 0 : i32
    return %c0_i32, %c0_i32_0 : i32, i32
  }
  func.func @transform_3(%arg0: i32) -> (i32, i32) {
    %c0_i32 = arith.constant 0 : i32
    %c0_i32_0 = arith.constant 0 : i32
    %c0_i32_1 = arith.constant 0 : i32
    return %c0_i32, %c0_i32_0 : i32, i32
  }
  func.func @transform_4(%arg0: i32) -> (i32, i32) {
    %c0_i32 = arith.constant 0 : i32
    %c0_i32_0 = arith.constant 0 : i32
    %c0_i32_1 = arith.constant 0 : i32
    return %c0_i32, %c0_i32_0 : i32, i32
  }
  func.func @transform_5(%arg0: i32) -> (i32, i32) {
    %c0_i32 = arith.constant 0 : i32
    %c0_i32_0 = arith.constant 0 : i32
    return %c0_i32, %arg0 : i32, i32
  }
}

</mosaic_0001>

<llo_original>
// kernel: tpu_custom_call.1
$region0: #{tpu_custom_call.1}
  #allocation0 [shape = 'u32[]', space=smem, size = 0x4, offset = 0x4, fixed_abs, tag = 'smem constant byte address 0x4 - core index']
  #allocation1 [shape = 'u32[144,128]{1,0:T(1,128)}', space=vmem, size = 0x12000, scoped, tag = 'internal scratch']
  %s0 = inlined_call_operand.hbm [shape: bf16[36,512], index: 0, kind: input, shape index: {}]
  %s1 = inlined_call_operand.vmem [shape: bf16[32,36], index: 1, kind: input, shape index: {}]
  %s2 = inlined_call_operand.vmem [shape: f32[32,1], index: 2, kind: input, shape index: {}]
  %s3 = inlined_call_operand.vmem [shape: f32[9,32], index: 3, kind: input, shape index: {}]
  %s4 = inlined_call_operand.vmem [shape: f32[9,1], index: 4, kind: input, shape index: {}]
  %s5 = inlined_call_operand.hbm [shape: f32[9,512], index: 5, kind: output, shape index: {}]
  %s6 = sld [smem:[#allocation0]]
  $region34: #{tpu_custom_call.1} parent=0
    _
  %s8 = ssub.s32 1, %s6
  %s9 = scalar_select 0, %s8, %s6
  $region1: #{tpu_custom_call.1} parent=0
    #allocation2 [shape = 'u8[40960]{0}', space=vmem, size = 0xa000, scoped, tag = 'input window, operand 0, single buffered']
    #allocation3 [shape = 's32[1]{0}', space=sflag, size = 0x4, scoped, tag = 'scoped memory for tpu_custom_call.1']
    #allocation4 [shape = 's32[1]{0}', space=sflag, size = 0x4, scoped, tag = 'scoped memory for tpu_custom_call.1']
    #allocation5 [shape = 'u8[32768]{0}', space=vmem, size = 0x8000, scoped, tag = 'output window, operand 0, single buffered']
    %10 = vsyncpa [#allocation3], 0
    %11 = vsyncpa [#allocation4], 0
    // Predicated region
    $region2: #{tpu_custom_call.1} parent=1 // pred_check
      _
    $region3: #{tpu_custom_call.1} parent=1 // pred_check_branch
      %13 = sbr.rel (0) target = $region5
    $region4: #{tpu_custom_call.1} parent=1 // pred_region
      %s15 = ssub.s32 1280, 1280
      %16 = vsyncadd [#allocation3], %s15
      %s17 = sshll.u32 [#allocation2], 4
      %s18 = int_to_ptr.vmem [resolvable:$true] %s17
      %23 = dma.hbm_to_vmem [thread:$0]  %s0, 1280, %s18, [#allocation3], 256, 256, 16
    $region5: #{tpu_custom_call.1} parent=1 // pred_fallthru
      _
    // Predicated region
    $region6: #{tpu_custom_call.1} parent=1 // pred_check
      _
    $region7: #{tpu_custom_call.1} parent=1 // pred_check_branch
      %25 = sbr.rel (0) target = $region9
    $region8: #{tpu_custom_call.1} parent=1 // pred_region
      _
    $region9: #{tpu_custom_call.1} parent=1 // pred_fallthru
      _
    // Predicated region
    $region10: #{tpu_custom_call.1} parent=1 // pred_check
      _
    $region11: #{tpu_custom_call.1} parent=1 // pred_check_branch
      %27 = sbr.rel (0) target = $region13
    $region12: #{tpu_custom_call.1} parent=1 // pred_region
      _
    $region13: #{tpu_custom_call.1} parent=1 // pred_fallthru
      _
    // Predicated region
    $region14: #{tpu_custom_call.1} parent=1 // pred_check
      _
    $region15: #{tpu_custom_call.1} parent=1 // pred_check_branch
      %29 = sbr.rel (0) target = $region17
    $region16: #{tpu_custom_call.1} parent=1 // pred_region
      _
    $region17: #{tpu_custom_call.1} parent=1 // pred_fallthru
      _
    // Predicated region
    $region18: #{tpu_custom_call.1} parent=1 // pred_check
      _
    $region19: #{tpu_custom_call.1} parent=1 // pred_check_branch
      %31 = sbr.rel (0) target = $region21
    $region20: #{tpu_custom_call.1} parent=1 // pred_region
      _
    $region21: #{tpu_custom_call.1} parent=1 // pred_fallthru
      _
    // Predicated region
    $region22: #{tpu_custom_call.1} parent=1 // pred_check
      _
    $region23: #{tpu_custom_call.1} parent=1 // pred_check_branch
      %33 = sbr.rel (0) target = $region25
    $region24: #{tpu_custom_call.1} parent=1 // pred_region
      %34 = dma.done [#allocation3], 1280
    $region25: #{tpu_custom_call.1} parent=1 // pred_fallthru
      _
    %v36 = vld [vmem:[%s1] sm:$0xf]
    %v37 = vld [vmem:[%s1 + $0x4] sm:$0xf]
    %v38 = vld [vmem:[%s1 + $0x8] sm:$0xf]
    %v39 = vld [vmem:[%s1 + $0xc] sm:$0xf]
    %v40 = vld [vmem:[#allocation2] sm:$0xff]
    %v41 = vld [vmem:[#allocation2 + $0x8] sm:$0xff]
    %v42 = vld [vmem:[#allocation2 + $0x10] sm:$0xff]
    %v43 = vld [vmem:[#allocation2 + $0x18] sm:$0xff]
    %v44 = vld [vmem:[#allocation2 + $0x20] sm:$0xff]
    %v45 = vld [vmem:[#allocation2 + $0x28] sm:$0xff]
    %v46 = vld [vmem:[#allocation2 + $0x30] sm:$0xff]
    %v47 = vld [vmem:[#allocation2 + $0x38] sm:$0xff]
    %v48 = vld [vmem:[#allocation2 + $0x40] sm:$0x33]
    %v49 = vld [vmem:[#allocation2 + $0x48] sm:$0x33]
    %v50 = vld [vmem:[%s2] sm:$0xff]
    %v51 = vld [vmem:[%s2 + $0x8] sm:$0xff]
    %v52 = vld [vmem:[%s2 + $0x10] sm:$0xff]
    %v53 = vld [vmem:[%s2 + $0x18] sm:$0xff]
    %55 = vset.pattern.permute.xlu0 0
    %56 = vperm.xlu0 %55, %v50
    %v57 = vpop.permute.xlu0 %56
    %60 = vset.pattern.permute.xlu0 0
    %61 = vperm.xlu0 %60, %v51
    %v62 = vpop.permute.xlu0 %61
    %65 = vset.pattern.permute.xlu0 0
    %66 = vperm.xlu0 %65, %v52
    %v67 = vpop.permute.xlu0 %66
    %70 = vset.pattern.permute.xlu0 0
    %71 = vperm.xlu0 %70, %v53
    %v72 = vpop.permute.xlu0 %71
    %v78 = vunpack.c.l.b16 %v36
    %v79 = vunpack.c.l.b16 %v37
    %v80 = vunpack.c.l.b16 %v38
    %v81 = vunpack.c.l.b16 %v39
    %v82 = vpack.c.b16 %v79, %v78
    %v83 = vpack.c.b16 %v81, %v80
    %v94 = vunpack.c.l.b16 %v40
    %v95 = vunpack.c.h.b16 %v40
    %v96 = vunpack.c.l.b16 %v41
    %v97 = vunpack.c.h.b16 %v41
    %v98 = vunpack.c.l.b16 %v42
    %v99 = vunpack.c.h.b16 %v42
    %v100 = vunpack.c.l.b16 %v43
    %v101 = vunpack.c.h.b16 %v43
    %v102 = vunpack.c.l.b16 %v44
    %v103 = vunpack.c.h.b16 %v44
    %v104 = vunpack.c.l.b16 %v45
    %v105 = vunpack.c.h.b16 %v45
    %v106 = vunpack.c.l.b16 %v46
    %v107 = vunpack.c.h.b16 %v46
    %v108 = vunpack.c.l.b16 %v47
    %v109 = vunpack.c.h.b16 %v47
    %v110 = vunpack.c.l.b16 %v48
    %v111 = vunpack.c.h.b16 %v48
    %v112 = vunpack.c.l.b16 %v49
    %v113 = vunpack.c.h.b16 %v49
    %v114 = vpack.c.b16 %v98, %v94
    %v115 = vpack.c.b16 %v99, %v95
    %v116 = vpack.c.b16 %v100, %v96
    %v117 = vpack.c.b16 %v101, %v97
    %v118 = vpack.c.b16 %v106, %v102
    %v119 = vpack.c.b16 %v107, %v103
    %v120 = vpack.c.b16 %v108, %v104
    %v121 = vpack.c.b16 %v109, %v105
    %v122 = vpack.c.b16 %v110, %v110
    %v123 = vpack.c.b16 %v111, %v111
    %v124 = vpack.c.b16 %v112, %v112
    %v125 = vpack.c.b16 %v113, %v113
    %vm134 = vcmask 293888
    %v136 = vsel %vm134, %v82, 0
    %v139 = vsel %vm134, %v83, 0
    %vm141 = vcmask 1041408
    %v143 = vsel %vm141, %v122, 0
    %v146 = vsel %vm141, %v123, 0
    %v149 = vsel %vm141, %v124, 0
    %v152 = vsel %vm141, %v125, 0
    %154 = vmatprep.subr.bf16.mxu0 %v115
    %155 = vmatpush1.bf16.msra.mxu0 %v114
    %156 = vmatprep.subr.bf16.mxu0 %v119
    %157 = vmatpush1.bf16.msra.mxu0 %v118
    %158 = vmatprep.subr.bf16.mxu0 %v146
    %159 = vmatpush1.bf16.msra.mxu0 %v143
    %160 = vmatprep.subr.bf16.mxu0 0
    %161 = vmatpush1.bf16.msra.mxu0 0
    %162 = vmatprep.subr.bf16.mxu0 0
    %163 = vmatpush1.bf16.msra.mxu0 0
    %164 = vmatprep.subr.bf16.mxu0 0
    %165 = vmatpush1.bf16.msra.mxu0 0
    %166 = vmatprep.subr.bf16.mxu0 0
    %167 = vmatpush1.bf16.msra.mxu0 0
    %168 = vmatprep.subr.bf16.mxu0 0
    %169 = vmatpush1.bf16.msra.mxu0 0
    %170 = vmatprep.subr.bf16.mxu0 0
    %171 = vmatpush1.bf16.msra.mxu0 0
    %172 = vmatprep.subr.bf16.mxu0 0
    %173 = vmatpush1.bf16.msra.mxu0 0
    %174 = vmatprep.subr.bf16.mxu0 0
    %175 = vmatpush1.bf16.msra.mxu0 0
    %176 = vmatprep.subr.bf16.mxu0 0
    %177 = vmatpush1.bf16.msra.mxu0 0
    %178 = vmatprep.subr.bf16.mxu0 0
    %179 = vmatpush1.bf16.msra.mxu0 0
    %180 = vmatprep.subr.bf16.mxu0 0
    %181 = vmatpush1.bf16.msra.mxu0 0
    %182 = vmatprep.subr.bf16.mxu0 0
    %183 = vmatpush1.bf16.msra.mxu0 0
    %184 = vmatprep.subr.bf16.mxu0 0
    %185 = vmatpush1.bf16.msra.mxu0 0
    %186 = vmatprep.mubr.bf16.mxu0 0
    %187 = vmatmul.mubr.bf16.gmra.mrb[0].mxu0 %v136
    %v188 = vpop.f32.mrb[0].mxu0
    %v189 = vadd.f32 %v57, %v188
    %v190 = vpop.f32.mrb[0].mxu0
    %v191 = vadd.f32 %v57, %v190
    %v192 = vpop.f32.mrb[0].mxu0
    %v193 = vadd.f32 %v62, %v192
    %v194 = vpop.f32.mrb[0].mxu0
    %v195 = vadd.f32 %v62, %v194
    %196 = vmatprep.mubr.bf16.mxu0 0
    %197 = vmatmul.mubr.bf16.gmra.mrb[0].mxu0 %v139
    %v198 = vpop.f32.mrb[0].mxu0
    %v199 = vadd.f32 %v67, %v198
    %v200 = vpop.f32.mrb[0].mxu0
    %v201 = vadd.f32 %v67, %v200
    %v202 = vpop.f32.mrb[0].mxu0
    %v203 = vadd.f32 %v72, %v202
    %v204 = vpop.f32.mrb[0].mxu0
    %v205 = vadd.f32 %v72, %v204
    %206 = vdwg.mxu0
    %207 = vmatprep.subr.bf16.mxu0 %v117
    %208 = vmatpush1.bf16.msra.mxu0 %v116
    %209 = vmatprep.subr.bf16.mxu0 %v121
    %210 = vmatpush1.bf16.msra.mxu0 %v120
    %211 = vmatprep.subr.bf16.mxu0 %v152
    %212 = vmatpush1.bf16.msra.mxu0 %v149
    %213 = vmatprep.subr.bf16.mxu0 0
    %214 = vmatpush1.bf16.msra.mxu0 0
    %215 = vmatprep.subr.bf16.mxu0 0
    %216 = vmatpush1.bf16.msra.mxu0 0
    %217 = vmatprep.subr.bf16.mxu0 0
    %218 = vmatpush1.bf16.msra.mxu0 0
    %219 = vmatprep.subr.bf16.mxu0 0
    %220 = vmatpush1.bf16.msra.mxu0 0
    %221 = vmatprep.subr.bf16.mxu0 0
    %222 = vmatpush1.bf16.msra.mxu0 0
    %223 = vmatprep.subr.bf16.mxu0 0
    %224 = vmatpush1.bf16.msra.mxu0 0
    %225 = vmatprep.subr.bf16.mxu0 0
    %226 = vmatpush1.bf16.msra.mxu0 0
    %227 = vmatprep.subr.bf16.mxu0 0
    %228 = vmatpush1.bf16.msra.mxu0 0
    %229 = vmatprep.subr.bf16.mxu0 0
    %230 = vmatpush1.bf16.msra.mxu0 0
    %231 = vmatprep.subr.bf16.mxu0 0
    %232 = vmatpush1.bf16.msra.mxu0 0
    %233 = vmatprep.subr.bf16.mxu0 0
    %234 = vmatpush1.bf16.msra.mxu0 0
    %235 = vmatprep.subr.bf16.mxu0 0
    %236 = vmatpush1.bf16.msra.mxu0 0
    %237 = vmatprep.subr.bf16.mxu0 0
    %238 = vmatpush1.bf16.msra.mxu0 0
    %239 = vmatprep.mubr.bf16.mxu0 0
    %240 = vmatmul.mubr.bf16.gmra.mrb[0].mxu0 %v136
    %v241 = vpop.f32.mrb[0].mxu0
    %v242 = vadd.f32 %v57, %v241
    %v243 = vpop.f32.mrb[0].mxu0
    %v244 = vadd.f32 %v57, %v243
    %v245 = vpop.f32.mrb[0].mxu0
    %v246 = vadd.f32 %v62, %v245
    %v247 = vpop.f32.mrb[0].mxu0
    %v248 = vadd.f32 %v62, %v247
    %249 = vmatprep.mubr.bf16.mxu0 0
    %250 = vmatmul.mubr.bf16.gmra.mrb[0].mxu0 %v139
    %v251 = vpop.f32.mrb[0].mxu0
    %v252 = vadd.f32 %v67, %v251
    %v253 = vpop.f32.mrb[0].mxu0
    %v254 = vadd.f32 %v67, %v253
    %v255 = vpop.f32.mrb[0].mxu0
    %v256 = vadd.f32 %v72, %v255
    %v257 = vpop.f32.mrb[0].mxu0
    %v258 = vadd.f32 %v72, %v257
    %259 = vdwg.mxu0
    %v260 = vmax.f32 %v189, 0.0
    %v261 = vmax.f32 %v191, 0.0
    %v262 = vmax.f32 %v242, 0.0
    %v263 = vmax.f32 %v244, 0.0
    %v264 = vmax.f32 %v193, 0.0
    %v265 = vmax.f32 %v195, 0.0
    %v266 = vmax.f32 %v246, 0.0
    %v267 = vmax.f32 %v248, 0.0
    %v268 = vmax.f32 %v199, 0.0
    %v269 = vmax.f32 %v201, 0.0
    %v270 = vmax.f32 %v252, 0.0
    %v271 = vmax.f32 %v254, 0.0
    %v272 = vmax.f32 %v203, 0.0
    %v273 = vmax.f32 %v205, 0.0
    %v274 = vmax.f32 %v256, 0.0
    %v275 = vmax.f32 %v258, 0.0
    %v276 = vld [vmem:[%s3] sm:$0xff]
    %v277 = vld [vmem:[%s3 + $0x8] sm:$0x1]
    %v278 = vld [vmem:[%s4] sm:$0xff]
    %v279 = vld [vmem:[%s4 + $0x8] sm:$0x1]
    %281 = vset.pattern.permute.xlu0 0
    %282 = vperm.xlu0 %281, %v278
    %v283 = vpop.permute.xlu0 %282
    %286 = vset.pattern.permute.xlu0 0
    %287 = vperm.xlu0 %286, %v279
    %v288 = vpop.permute.xlu0 %287
    %vm290 = vcmask 261120
    %v292 = vsel %vm290, %v276, 0
    %v295 = vsel %vm290, %v277, 0
    %297 = vmatprep.subr.mxu0 %v261
    %298 = vmatpush1.msra.mxu0 %v260
    %299 = vmatprep.subr.mxu0 %v265
    %300 = vmatpush1.msra.mxu0 %v264
    %301 = vmatprep.subr.mxu0 %v269
    %302 = vmatpush1.msra.mxu0 %v268
    %303 = vmatprep.subr.mxu0 %v273
    %304 = vmatpush1.msra.mxu0 %v272
    %305 = vmatprep.subr.mxu0 0.0
    %306 = vmatpush1.msra.mxu0 0.0
    %307 = vmatprep.subr.mxu0 0.0
    %308 = vmatpush1.msra.mxu0 0.0
    %309 = vmatprep.subr.mxu0 0.0
    %310 = vmatpush1.msra.mxu0 0.0
    %311 = vmatprep.subr.mxu0 0.0
    %312 = vmatpush1.msra.mxu0 0.0
    %313 = vmatprep.subr.mxu0 0.0
    %314 = vmatpush1.msra.mxu0 0.0
    %315 = vmatprep.subr.mxu0 0.0
    %316 = vmatpush1.msra.mxu0 0.0
    %317 = vmatprep.subr.mxu0 0.0
    %318 = vmatpush1.msra.mxu0 0.0
    %319 = vmatprep.subr.mxu0 0.0
    %320 = vmatpush1.msra.mxu0 0.0
    %321 = vmatprep.subr.mxu0 0.0
    %322 = vmatpush1.msra.mxu0 0.0
    %323 = vmatprep.subr.mxu0 0.0
    %324 = vmatpush1.msra.mxu0 0.0
    %325 = vmatprep.subr.mxu0 0.0
    %326 = vmatpush1.msra.mxu0 0.0
    %327 = vmatprep.subr.mxu0 0.0
    %328 = vmatpush1.msra.mxu0 0.0
    %329 = vmatprep.subr.mxu0 0.0
    %330 = vmatpush1.msra.mxu0 0.0
    %331 = vmatprep.subr.mxu0 0.0
    %332 = vmatpush1.msra.mxu0 0.0
    %333 = vmatprep.subr.mxu0 0.0
    %334 = vmatpush1.msra.mxu0 0.0
    %335 = vmatprep.subr.mxu0 0.0
    %336 = vmatpush1.msra.mxu0 0.0
    %337 = vmatprep.subr.mxu0 0.0
    %338 = vmatpush1.msra.mxu0 0.0
    %339 = vmatprep.subr.mxu0 0.0
    %340 = vmatpush1.msra.mxu0 0.0
    %341 = vmatprep.subr.mxu0 0.0
    %342 = vmatpush1.msra.mxu0 0.0
    %343 = vmatprep.subr.mxu0 0.0
    %344 = vmatpush1.msra.mxu0 0.0
    %345 = vmatprep.subr.mxu0 0.0
    %346 = vmatpush1.msra.mxu0 0.0
    %347 = vmatprep.subr.mxu0 0.0
    %348 = vmatpush1.msra.mxu0 0.0
    %349 = vmatprep.subr.mxu0 0.0
    %350 = vmatpush1.msra.mxu0 0.0
    %351 = vmatprep.subr.mxu0 0.0
    %352 = vmatpush1.msra.mxu0 0.0
    %353 = vmatprep.subr.mxu0 0.0
    %354 = vmatpush1.msra.mxu0 0.0
    %355 = vmatprep.subr.mxu0 0.0
    %356 = vmatpush1.msra.mxu0 0.0
    %357 = vmatprep.subr.mxu0 0.0
    %358 = vmatpush1.msra.mxu0 0.0
    %359 = vmatprep.subr.mxu0 0.0
    %360 = vmatpush1.msra.mxu0 0.0
    %361 = vmatprep.mubr.f32.mxu0 0.0
    %362 = vmatmul.mubr.f32.gmra.mrb[0].mxu0 %v292
    %v363 = vpop.f32.mrb[0].mxu0
    %v364 = vadd.f32 %v283, %v363
    %v365 = vpop.f32.mrb[0].mxu0
    %v366 = vadd.f32 %v283, %v365
    %367 = vmatprep.mubr.f32.mxu0 0.0
    %368 = vmatmul.mubr.f32.gmra.mrb[0].mxu0 %v295
    %v369 = vpop.f32.mrb[0].mxu0
    %v370 = vadd.f32 %v288, %v369
    %v371 = vpop.f32.mrb[0].mxu0
    %v372 = vadd.f32 %v288, %v371
    %373 = vdwg.mxu0
    %374 = vmatprep.subr.mxu0 %v263
    %375 = vmatpush1.msra.mxu0 %v262
    %376 = vmatprep.subr.mxu0 %v267
    %377 = vmatpush1.msra.mxu0 %v266
    %378 = vmatprep.subr.mxu0 %v271
    %379 = vmatpush1.msra.mxu0 %v270
    %380 = vmatprep.subr.mxu0 %v275
    %381 = vmatpush1.msra.mxu0 %v274
    %382 = vmatprep.subr.mxu0 0.0
    %383 = vmatpush1.msra.mxu0 0.0
    %384 = vmatprep.subr.mxu0 0.0
    %385 = vmatpush1.msra.mxu0 0.0
    %386 = vmatprep.subr.mxu0 0.0
    %387 = vmatpush1.msra.mxu0 0.0
    %388 = vmatprep.subr.mxu0 0.0
    %389 = vmatpush1.msra.mxu0 0.0
    %390 = vmatprep.subr.mxu0 0.0
    %391 = vmatpush1.msra.mxu0 0.0
    %392 = vmatprep.subr.mxu0 0.0
    %393 = vmatpush1.msra.mxu0 0.0
    %394 = vmatprep.subr.mxu0 0.0
    %395 = vmatpush1.msra.mxu0 0.0
    %396 = vmatprep.subr.mxu0 0.0
    %397 = vmatpush1.msra.mxu0 0.0
    %398 = vmatprep.subr.mxu0 0.0
    %399 = vmatpush1.msra.mxu0 0.0
    %400 = vmatprep.subr.mxu0 0.0
    %401 = vmatpush1.msra.mxu0 0.0
    %402 = vmatprep.subr.mxu0 0.0
    %403 = vmatpush1.msra.mxu0 0.0
    %404 = vmatprep.subr.mxu0 0.0
    %405 = vmatpush1.msra.mxu0 0.0
    %406 = vmatprep.subr.mxu0 0.0
    %407 = vmatpush1.msra.mxu0 0.0
    %408 = vmatprep.subr.mxu0 0.0
    %409 = vmatpush1.msra.mxu0 0.0
    %410 = vmatprep.subr.mxu0 0.0
    %411 = vmatpush1.msra.mxu0 0.0
    %412 = vmatprep.subr.mxu0 0.0
    %413 = vmatpush1.msra.mxu0 0.0
    %414 = vmatprep.subr.mxu0 0.0
    %415 = vmatpush1.msra.mxu0 0.0
    %416 = vmatprep.subr.mxu0 0.0
    %417 = vmatpush1.msra.mxu0 0.0
    %418 = vmatprep.subr.mxu0 0.0
    %419 = vmatpush1.msra.mxu0 0.0
    %420 = vmatprep.subr.mxu0 0.0
    %421 = vmatpush1.msra.mxu0 0.0
    %422 = vmatprep.subr.mxu0 0.0
    %423 = vmatpush1.msra.mxu0 0.0
    %424 = vmatprep.subr.mxu0 0.0
    %425 = vmatpush1.msra.mxu0 0.0
    %426 = vmatprep.subr.mxu0 0.0
    %427 = vmatpush1.msra.mxu0 0.0
    %428 = vmatprep.subr.mxu0 0.0
    %429 = vmatpush1.msra.mxu0 0.0
    %430 = vmatprep.subr.mxu0 0.0
    %431 = vmatpush1.msra.mxu0 0.0
    %432 = vmatprep.subr.mxu0 0.0
    %433 = vmatpush1.msra.mxu0 0.0
    %434 = vmatprep.subr.mxu0 0.0
    %435 = vmatpush1.msra.mxu0 0.0
    %436 = vmatprep.subr.mxu0 0.0
    %437 = vmatpush1.msra.mxu0 0.0
    %438 = vmatprep.mubr.f32.mxu0 0.0
    %439 = vmatmul.mubr.f32.gmra.mrb[0].mxu0 %v292
    %v440 = vpop.f32.mrb[0].mxu0
    %v441 = vadd.f32 %v283, %v440
    %v442 = vpop.f32.mrb[0].mxu0
    %v443 = vadd.f32 %v283, %v442
    %444 = vmatprep.mubr.f32.mxu0 0.0
    %445 = vmatmul.mubr.f32.gmra.mrb[0].mxu0 %v295
    %v446 = vpop.f32.mrb[0].mxu0
    %v447 = vadd.f32 %v288, %v446
    %v448 = vpop.f32.mrb[0].mxu0
    %v449 = vadd.f32 %v288, %v448
    %450 = vdwg.mxu0
    %v451 = vlaneseq
    %v452 = vshrl.u32 %v451, 7
    %v453 = vadd.s32 %v452, 8
    %vm454 = vcmp.lt.s32.totalorder %v452, 2
    %vm455 = vcmp.lt.s32.totalorder %v453, 2
    %v456 = vxor.u32 %v364, 2147483648
    %v457 = vxor.u32 %v366, 2147483648
    %v458 = vxor.u32 %v441, 2147483648
    %v459 = vxor.u32 %v443, 2147483648
    %v460 = vxor.u32 %v370, 2147483648
    %v461 = vxor.u32 %v372, 2147483648
    %v462 = vxor.u32 %v447, 2147483648
    %v463 = vxor.u32 %v449, 2147483648
    %v464 = vmul.f32 %v456, 1.442695
    %v465 = vpow.pop %v464
    %v466 = vmul.f32 %v457, 1.442695
    %v467 = vpow.pop %v466
    %v468 = vmul.f32 %v458, 1.442695
    %v469 = vpow.pop %v468
    %v470 = vmul.f32 %v459, 1.442695
    %v471 = vpow.pop %v470
    %v472 = vmul.f32 %v460, 1.442695
    %v473 = vpow.pop %v472
    %v474 = vmul.f32 %v461, 1.442695
    %v475 = vpow.pop %v474
    %v476 = vmul.f32 %v462, 1.442695
    %v477 = vpow.pop %v476
    %v478 = vmul.f32 %v463, 1.442695
    %v479 = vpow.pop %v478
    %v480 = vadd.f32 %v465, 1.0
    %v481 = vadd.f32 %v467, 1.0
    %v482 = vadd.f32 %v469, 1.0
    %v483 = vadd.f32 %v471, 1.0
    %v484 = vadd.f32 %v473, 1.0
    %v485 = vadd.f32 %v475, 1.0
    %v486 = vadd.f32 %v477, 1.0
    %v487 = vadd.f32 %v479, 1.0
    %v488 = vrcp.pop %v480
    %v489 = vmul.f32 1.0, %v488
    %v490 = vrcp.pop %v481
    %v491 = vmul.f32 1.0, %v490
    %v492 = vrcp.pop %v482
    %v493 = vmul.f32 1.0, %v492
    %v494 = vrcp.pop %v483
    %v495 = vmul.f32 1.0, %v494
    %v496 = vrcp.pop %v484
    %v497 = vmul.f32 1.0, %v496
    %v498 = vrcp.pop %v485
    %v499 = vmul.f32 1.0, %v498
    %v500 = vrcp.pop %v486
    %v501 = vmul.f32 1.0, %v500
    %v502 = vrcp.pop %v487
    %v503 = vmul.f32 1.0, %v502
    %vm504 = vcmp.lt.s32.totalorder %v452, 4
    %vm505 = vcmp.lt.s32.totalorder %v453, 4
    %v506 = vtanh.pop %v364
    %v507 = vtanh.pop %v366
    %v508 = vtanh.pop %v441
    %v509 = vtanh.pop %v443
    %v510 = vtanh.pop %v370
    %v511 = vtanh.pop %v372
    %v512 = vtanh.pop %v447
    %v513 = vtanh.pop %v449
    %v514 = vsel %vm504, %v506, %v364
    %v515 = vsel %vm504, %v507, %v366
    %v516 = vsel %vm504, %v508, %v441
    %v517 = vsel %vm504, %v509, %v443
    %v518 = vsel %vm505, %v510, %v370
    %v519 = vsel %vm505, %v511, %v372
    %v520 = vsel %vm505, %v512, %v447
    %v521 = vsel %vm505, %v513, %v449
    %v522 = vsel %vm454, %v489, %v514
    %v523 = vsel %vm454, %v491, %v515
    %v524 = vsel %vm454, %v493, %v516
    %v525 = vsel %vm454, %v495, %v517
    %v526 = vsel %vm455, %v497, %v518
    %v527 = vsel %vm455, %v499, %v519
    %v528 = vsel %vm455, %v501, %v520
    %v529 = vsel %vm455, %v503, %v521
    %530 = vst [vmem:[#allocation5] sm:$0xff] %v522
    %531 = vst [vmem:[#allocation5 + $0x8] sm:$0xff] %v523
    %532 = vst [vmem:[#allocation5 + $0x10] sm:$0xff] %v524
    %533 = vst [vmem:[#allocation5 + $0x18] sm:$0xff] %v525
    %534 = vst [vmem:[#allocation5 + $0x20] sm:$0x1] %v526
    %535 = vst [vmem:[#allocation5 + $0x28] sm:$0x1] %v527
    %536 = vst [vmem:[#allocation5 + $0x30] sm:$0x1] %v528
    %537 = vst [vmem:[#allocation5 + $0x38] sm:$0x1] %v529
    // Predicated region
    $region26: #{tpu_custom_call.1} parent=1 // pred_check
      _
    $region27: #{tpu_custom_call.1} parent=1 // pred_check_branch
      %539 = sbr.rel (0) target = $region29
    $region28: #{tpu_custom_call.1} parent=1 // pred_region
      %s541 = ssub.s32 1024, 1024
      %542 = vsyncadd [#allocation4], %s541
      %s543 = sshll.u32 [#allocation5], 4
      %s544 = int_to_ptr.vmem [resolvable:$true] %s543
      %549 = dma.vmem_to_hbm [thread:$0]  %s544, 1024, %s5, [#allocation4], 512, 512, 32
    $region29: #{tpu_custom_call.1} parent=1 // pred_fallthru
      _
    // Predicated region
    $region30: #{tpu_custom_call.1} parent=1 // pred_check
      _
    $region31: #{tpu_custom_call.1} parent=1 // pred_check_branch
      %551 = sbr.rel (0) target = $region33
    $region32: #{tpu_custom_call.1} parent=1 // pred_region
      %552 = dma.done [#allocation4], 1024
    $region33: #{tpu_custom_call.1} parent=1 // pred_fallthru
      _
    %553 = vsyncpa [#allocation3], 1
    %554 = vsyncpa [#allocation4], 1

</llo_original>
